<compile_context>
chip_gen: v7x
topology: tpu7x:2x2x1
jax: 0.10.0
libtpu: 0.0.40
codegen_flags: <defaults>
</compile_context>

<pallas_src>
import functools

import jax
import jax.numpy as jnp
from jax.experimental import pallas as pl
from jax.experimental.pallas import tpu as pltpu


def _round_up(n, m):
    return ((n + m - 1) // m) * m


def _pick_block_b(B, feat_dim, *, vmem_budget_bytes=24 * 1024 * 1024, max_block_b=512):
    """Largest batch tile that (a) amortizes the ~0.35us per-grid-step overhead,
    (b) keeps the double-buffered bf16 x tile inside a conservative VMEM budget
    (safe on v7x's 64 MiB as well as v5e/v6e's 128 MiB), and (c) keeps the f32
    [hidden, block_b] intermediate within the 64-vreg file (hence the 512 cap;
    bigger tiles would spill)."""
    bytes_per_batch_col = 2 * feat_dim * 2          # double-buffered * bf16
    vmem_cap = max(128, vmem_budget_bytes // max(bytes_per_batch_col, 1))
    bb = min(max_block_b, vmem_cap, _round_up(B, 128))
    return max(128, (bb // 128) * 128)


def _mlp_kernel(xt_ref, w1_ref, b1_ref, w2_ref, b2_ref, w3_ref, b3_ref, o_ref):
    # xt: [feat_dim, block_b] bf16 -- batch on the lane axis.
    x_t = xt_ref[...]

    # fc1: [hidden, feat] @ [feat, block_b] -> [hidden, block_b]  (bf16 MXU, f32 acc)
    h1 = jnp.dot(w1_ref[...], x_t, preferred_element_type=jnp.float32)
    h1 = jnp.maximum(h1 + b1_ref[...], 0.0).astype(jnp.bfloat16)

    # fc2: [hidden2, hidden] @ [hidden, block_b] -> [hidden2, block_b]
    h2 = jnp.dot(w2_ref[...], h1, preferred_element_type=jnp.float32)
    h2 = jnp.maximum(h2 + b2_ref[...], 0.0)

    # fc3 (N=1): VPU multiply + sublane (XLU) reduction instead of an MXU pass.
    out = jnp.sum(h2 * w3_ref[...], axis=0, keepdims=True) + b3_ref[...]

    # Lane-dense [1, block_b] store.
    o_ref[...] = out.astype(o_ref.dtype)


@functools.partial(jax.jit, static_argnames=("block_b",))
def reward_net_forward(x, w1, b1, w2, b2, w3, b3, *, block_b=None):
    """x: [B, feat_dim] float -> [B, 1] float32.

    Weights are in PyTorch layout: w1 [hidden, feat], w2 [hidden2, hidden];
    w3 is stored as [hidden2, 1]; biases as column vectors [out, 1] / [1, 1].
    """
    B, feat_dim = x.shape
    hidden, hidden2 = w1.shape[0], w2.shape[0]

    if block_b is None:
        block_b = _pick_block_b(B, feat_dim)
    assert block_b % 128 == 0, "block_b must be a multiple of 128 (lane width)"

    Bp = _round_up(B, block_b)

    # Layout plumbing fused with the bf16 downcast: batch onto the lane axis.
    x_t = x.T.astype(jnp.bfloat16)                  # [feat_dim, B]
    if Bp != B:
        x_t = jnp.pad(x_t, ((0, 0), (0, Bp - B)))
    w1b = w1.astype(jnp.bfloat16)
    w2b = w2.astype(jnp.bfloat16)

    grid = (Bp // block_b,)

    flops = 2 * Bp * (feat_dim * hidden + hidden * hidden2 + hidden2)
    bytes_accessed = (
        Bp * feat_dim * 2 + Bp * 4                  # x stream (bf16) + output (f32)
        + w1b.size * 2 + w2b.size * 2
        + (b1.size + b2.size + w3.size + b3.size) * 4
    )

    # Weights / biases are tiny: constant block index, full tensor every step.
    full = lambda a: pl.BlockSpec(a.shape, lambda i: (0, 0))

    out_row = pl.pallas_call(
        _mlp_kernel,
        out_shape=jax.ShapeDtypeStruct((1, Bp), jnp.float32),
        grid_spec=pltpu.PrefetchScalarGridSpec(
            num_scalar_prefetch=0,
            grid=grid,
            in_specs=[
                pl.BlockSpec((feat_dim, block_b), lambda i: (0, i)),  # x_t tile
                full(w1b), full(b1), full(w2b), full(b2), full(w3), full(b3),
            ],
            out_specs=pl.BlockSpec((1, block_b), lambda i: (0, i)),   # lane-dense
        ),
        compiler_params=pltpu.CompilerParams(
            dimension_semantics=("parallel",),          # lets v7x use both TCs
            vmem_limit_bytes=32 * 1024 * 1024,          # raise v5e's 16 MiB default
        ),
        cost_estimate=pl.CostEstimate(
            flops=flops, transcendentals=0, bytes_accessed=bytes_accessed
        ),
    )(x_t, w1b, b1, w2b, b2, w3, b3)

    return out_row[:, :B].reshape(B, 1)


def init_reward_net_params(key, feat_dim, hidden=50, hidden2=10):
    """PyTorch-style uniform(-1/sqrt(fan_in), 1/sqrt(fan_in)) init, kernel layout."""
    ks = jax.random.split(key, 6)

    def linear(kw, kb, fan_in, fan_out):
        bound = 1.0 / jnp.sqrt(float(fan_in))
        w = jax.random.uniform(kw, (fan_out, fan_in), jnp.float32, -bound, bound)
        b = jax.random.uniform(kb, (fan_out, 1), jnp.float32, -bound, bound)
        return w, b

    w1, b1 = linear(ks[0], ks[1], feat_dim, hidden)      # [hidden, feat], [hidden, 1]
    w2, b2 = linear(ks[2], ks[3], hidden, hidden2)       # [hidden2, hidden], [hidden2, 1]
    w3_t, b3 = linear(ks[4], ks[5], hidden2, 1)          # [1, hidden2], [1, 1]
    w3 = w3_t.T                                          # [hidden2, 1] (column form)
    return w1, b1, w2, b2, w3, b3


def reward_net_reference(x, w1, b1, w2, b2, w3, b3):
    """Pure-JAX reference mirroring the kernel's numerics: bf16 operands for the
    two MXU matmuls (f32 accumulate), f32 bias/ReLU, fc3 as an f32 reduction."""
    bf = lambda a: a.astype(jnp.bfloat16).astype(jnp.float32)
    h1 = jax.nn.relu(bf(x) @ bf(w1).T + b1.reshape(1, -1))
    h2 = jax.nn.relu(bf(h1) @ bf(w2).T + b2.reshape(1, -1))
    return jnp.sum(h2 * w3.reshape(1, -1), axis=-1, keepdims=True) + b3.reshape(1, 1)


if __name__ == "__main__":
    key = jax.random.PRNGKey(0)
    k_x, k_params = jax.random.split(key)

    B, feat_dim, hidden, hidden2 = 256, 32, 50, 10
    x = jax.random.normal(k_x, (B, feat_dim), jnp.float32)
    params = init_reward_net_params(k_params, feat_dim, hidden, hidden2)

    # block_b=128 -> 2 parallel grid steps (exercises megacore path on v7x);
    # for large B the wrapper default picks up to 512-row tiles automatically.
    out = reward_net_forward(x, *params, block_b=128)
    out = jax.block_until_ready(out)

    ref = reward_net_reference(x, *params)
    assert out.shape == (B, 1), out.shape
    # bf16 inputs + f32 accumulation: differences vs the bf16-rounded reference
    # come only from summation order / rare bf16 rounding knife-edges.
    assert jnp.allclose(out, ref, atol=2e-3, rtol=2e-3), "mismatch vs reference"

    print("KERNEL_OK")
</pallas_src>

<mosaic_0001>
module attributes {stable_mosaic.version = 11 : i64} {
  func.func @_mlp_kernel(%arg0: i32, %arg1: memref<32x128xbf16, #tpu.memory_space<vmem>>, %arg2: memref<50x32xbf16, #tpu.memory_space<vmem>>, %arg3: memref<50x1xf32, #tpu.memory_space<vmem>>, %arg4: memref<10x50xbf16, #tpu.memory_space<vmem>>, %arg5: memref<10x1xf32, #tpu.memory_space<vmem>>, %arg6: memref<10x1xf32, #tpu.memory_space<vmem>>, %arg7: memref<1x1xf32, #tpu.memory_space<vmem>>, %arg8: memref<1x128xf32, #tpu.memory_space<vmem>>) attributes {dimension_semantics = [#tpu.dimension_semantics<parallel>], iteration_bounds = array<i64: 2>, scalar_prefetch = 0 : i64, scratch_operands = 0 : i64, tpu.core_type = #tpu.core_type<tc>, window_params = [{transform_indices = @transform_0, window_bounds = array<i64: 32, 128>}, {pipeline_mode = #tpu.pipeline_mode<synchronous>, transform_indices = @transform_1, window_bounds = array<i64: 50, 32>}, {pipeline_mode = #tpu.pipeline_mode<synchronous>, transform_indices = @transform_2, window_bounds = array<i64: 50, 1>}, {pipeline_mode = #tpu.pipeline_mode<synchronous>, transform_indices = @transform_3, window_bounds = array<i64: 10, 50>}, {pipeline_mode = #tpu.pipeline_mode<synchronous>, transform_indices = @transform_4, window_bounds = array<i64: 10, 1>}, {pipeline_mode = #tpu.pipeline_mode<synchronous>, transform_indices = @transform_5, window_bounds = array<i64: 10, 1>}, {pipeline_mode = #tpu.pipeline_mode<synchronous>, transform_indices = @transform_6, window_bounds = array<i64: 1, 1>}, {transform_indices = @transform_7, window_bounds = array<i64: 1, 128>}]} {
    %c0 = arith.constant 0 : index
    %c0_0 = arith.constant 0 : index
    %0 = vector.load %arg1[%c0, %c0_0] : memref<32x128xbf16, #tpu.memory_space<vmem>>, vector<32x128xbf16>
    %c0_1 = arith.constant 0 : index
    %c0_2 = arith.constant 0 : index
    %1 = vector.load %arg2[%c0_1, %c0_2] : memref<50x32xbf16, #tpu.memory_space<vmem>>, vector<50x32xbf16>
    %cst = arith.constant dense<0.000000e+00> : vector<50x128xf32>
    %2 = tpu.matmul %1, %0, %cst {dimension_numbers = #tpu.dot_dimension_numbers<[1], [0], [0], [1], [0, 0, 1, 1], [], []>} : vector<50x32xbf16>, vector<32x128xbf16>, vector<50x128xf32> -> vector<50x128xf32>
    %c0_3 = arith.constant 0 : index
    %c0_4 = arith.constant 0 : index
    %3 = vector.load %arg3[%c0_3, %c0_4] : memref<50x1xf32, #tpu.memory_space<vmem>>, vector<50x1xf32>
    %4 = vector.broadcast %3 : vector<50x1xf32> to vector<50x128xf32>
    %5 = arith.addf %2, %4 : vector<50x128xf32>
    %cst_5 = arith.constant 0.000000e+00 : f32
    %6 = vector.broadcast %cst_5 : f32 to vector<50x128xf32>
    %7 = arith.maximumf %5, %6 : vector<50x128xf32>
    %8 = arith.truncf %7 : vector<50x128xf32> to vector<50x128xbf16>
    %c0_6 = arith.constant 0 : index
    %c0_7 = arith.constant 0 : index
    %9 = vector.load %arg4[%c0_6, %c0_7] : memref<10x50xbf16, #tpu.memory_space<vmem>>, vector<10x50xbf16>
    %cst_8 = arith.constant dense<0.000000e+00> : vector<10x128xf32>
    %10 = tpu.matmul %9, %8, %cst_8 {dimension_numbers = #tpu.dot_dimension_numbers<[1], [0], [0], [1], [0, 0, 1, 1], [], []>} : vector<10x50xbf16>, vector<50x128xbf16>, vector<10x128xf32> -> vector<10x128xf32>
    %c0_9 = arith.constant 0 : index
    %c0_10 = arith.constant 0 : index
    %11 = vector.load %arg5[%c0_9, %c0_10] : memref<10x1xf32, #tpu.memory_space<vmem>>, vector<10x1xf32>
    %12 = vector.broadcast %11 : vector<10x1xf32> to vector<10x128xf32>
    %13 = arith.addf %10, %12 : vector<10x128xf32>
    %cst_11 = arith.constant 0.000000e+00 : f32
    %14 = vector.broadcast %cst_11 : f32 to vector<10x128xf32>
    %15 = arith.maximumf %13, %14 : vector<10x128xf32>
    %c0_12 = arith.constant 0 : index
    %c0_13 = arith.constant 0 : index
    %16 = vector.load %arg6[%c0_12, %c0_13] : memref<10x1xf32, #tpu.memory_space<vmem>>, vector<10x1xf32>
    %17 = vector.broadcast %16 : vector<10x1xf32> to vector<10x128xf32>
    %18 = arith.mulf %15, %17 : vector<10x128xf32>
    %cst_14 = arith.constant dense<0.000000e+00> : vector<128xf32>
    %19 = vector.multi_reduction <add>, %18, %cst_14 [0] : vector<10x128xf32> to vector<128xf32>
    %20 = vector.shape_cast %19 : vector<128xf32> to vector<1x128xf32>
    %c0_15 = arith.constant 0 : index
    %c0_16 = arith.constant 0 : index
    %21 = vector.load %arg7[%c0_15, %c0_16] : memref<1x1xf32, #tpu.memory_space<vmem>>, vector<1x1xf32>
    %22 = vector.broadcast %21 : vector<1x1xf32> to vector<1x128xf32>
    %23 = arith.addf %20, %22 : vector<1x128xf32>
    %c0_17 = arith.constant 0 : index
    %c0_18 = arith.constant 0 : index
    %24 = vector.load %arg8[%c0_17, %c0_18] : memref<1x128xf32, #tpu.memory_space<vmem>>, vector<1x128xf32>
    tpu.vector_store %arg8[%c0_17, %c0_18], %23 {strides = array<i32>} : memref<1x128xf32, #tpu.memory_space<vmem>>, vector<1x128xf32>,
    return
  }
  func.func @transform_0(%arg0: i32) -> (i32, i32) {
    %c0_i32 = arith.constant 0 : i32
    %c0_i32_0 = arith.constant 0 : i32
    return %c0_i32, %arg0 : i32, i32
  }
  func.func @transform_1(%arg0: i32) -> (i32, i32) {
    %c0_i32 = arith.constant 0 : i32
    %c0_i32_0 = arith.constant 0 : i32
    %c0_i32_1 = arith.constant 0 : i32
    return %c0_i32, %c0_i32_0 : i32, i32
  }
  func.func @transform_2(%arg0: i32) -> (i32, i32) {
    %c0_i32 = arith.constant 0 : i32
    %c0_i32_0 = arith.constant 0 : i32
    %c0_i32_1 = arith.constant 0 : i32
    return %c0_i32, %c0_i32_0 : i32, i32
  }
  func.func @transform_3(%arg0: i32) -> (i32, i32) {
    %c0_i32 = arith.constant 0 : i32
    %c0_i32_0 = arith.constant 0 : i32
    %c0_i32_1 = arith.constant 0 : i32
    return %c0_i32, %c0_i32_0 : i32, i32
  }
  func.func @transform_4(%arg0: i32) -> (i32, i32) {
    %c0_i32 = arith.constant 0 : i32
    %c0_i32_0 = arith.constant 0 : i32
    %c0_i32_1 = arith.constant 0 : i32
    return %c0_i32, %c0_i32_0 : i32, i32
  }
  func.func @transform_5(%arg0: i32) -> (i32, i32) {
    %c0_i32 = arith.constant 0 : i32
    %c0_i32_0 = arith.constant 0 : i32
    %c0_i32_1 = arith.constant 0 : i32
    return %c0_i32, %c0_i32_0 : i32, i32
  }
  func.func @transform_6(%arg0: i32) -> (i32, i32) {
    %c0_i32 = arith.constant 0 : i32
    %c0_i32_0 = arith.constant 0 : i32
    %c0_i32_1 = arith.constant 0 : i32
    return %c0_i32, %c0_i32_0 : i32, i32
  }
  func.func @transform_7(%arg0: i32) -> (i32, i32) {
    %c0_i32 = arith.constant 0 : i32
    %c0_i32_0 = arith.constant 0 : i32
    return %c0_i32, %arg0 : i32, i32
  }
}

</mosaic_0001>

<llo_original>
// kernel: reward_net_forward.1
$region0: #{reward_net_forward.1}
  #allocation0 [shape = 'u32[]', space=smem, size = 0x4, offset = 0x4, fixed_abs, tag = 'smem constant byte address 0x4 - core index']
  #allocation1 [shape = 'u32[144,128]{1,0:T(1,128)}', space=vmem, size = 0x12000, scoped, tag = 'internal scratch']
  #allocation2 [shape = 'f32[1,1]{1,0:T(1,128)S(1)}', space=vmem, size = 0x200, scoped, tag = 'scoped memory for reward_net_forward.1']
  %s0 = inlined_call_operand.vmem [shape: bf16[32,256], index: 0, kind: input, shape index: {}]
  %s1 = inlined_call_operand.vmem [shape: bf16[50,32], index: 1, kind: input, shape index: {}]
  %s2 = inlined_call_operand.vmem [shape: f32[50,1], index: 2, kind: input, shape index: {}]
  %s3 = inlined_call_operand.vmem [shape: bf16[10,50], index: 3, kind: input, shape index: {}]
  %s4 = inlined_call_operand.vmem [shape: f32[10,1], index: 4, kind: input, shape index: {}]
  %s5 = inlined_call_operand.vmem [shape: f32[10,1], index: 5, kind: input, shape index: {}]
  %s6 = inlined_call_operand.<no memory space> [shape: f32[1,1], index: 6, kind: input, shape index: {}]
  %s7 = inlined_call_operand.hbm [shape: f32[1,256], index: 7, kind: output, shape index: {}]
  %s8 = sld [smem:[#allocation0]]
  $region102: #{reward_net_forward.1} parent=0
    _
  %s10 = ssub.s32 1, %s8
  %s11 = scalar_select 0, %s10, %s8
  %v12 = vstv %s6
  %13 = vst [vmem:[#allocation2] sm:$0x1] %v12
  $region1: #{reward_net_forward.1} parent=0
    #allocation3 [shape = 'u8[16384]{0}', space=vmem, size = 0x4000, scoped, tag = 'input window, operand 0']
    #allocation4 [shape = 'u8[1024]{0}', space=vmem, size = 0x400, scoped, tag = 'output window, operand 0']
    #allocation5 [shape = 's32[2]{0}', space=sflag, size = 0x8, scoped, tag = 'scoped memory for reward_net_forward.1']
    %14 = vsyncpa [#allocation5], 0
    %s15 = scalar_lea.sflag [#allocation5], 1
    %16 = vsyncpa %s15, 0
    loop: start=0, step=1, limit=4
    $region2: #{reward_net_forward.1} parent=1 // loop_pre_header
      _
    $region3: #{reward_net_forward.1} parent=1 // loop_header
      %s18 = sphi 0, %s22
      %p19 = scmp.ge.s32.totalorder %s18, 4
      %s28 = sphi 0, %s30
      %s31 = sphi 0, %s28
      %s32 = sphi 0, %s31
      %s48 = sphi 0, %s32
      %s52 = sphi 0, %s52
      %s54 = sphi 0, %s52
      %s55 = sphi 0, %s54
      %s69 = sphi 0, %s55
      %s73 = sphi 0, %s73
      %s75 = sphi 0, %s73
      %s76 = sphi 0, %s75
      %s90 = sphi 0, %s76
      %s94 = sphi 0, %s94
      %s96 = sphi 0, %s94
      %s97 = sphi 0, %s96
      %s111 = sphi 0, %s97
      %s115 = sphi 0, %s115
      %s117 = sphi 0, %s115
      %s118 = sphi 0, %s117
      %s132 = sphi 0, %s118
      %s136 = sphi 0, %s136
      %s138 = sphi 0, %s136
      %s139 = sphi 0, %s138
      %s153 = sphi 0, %s139
      %s157 = sphi 0, %s157
      %s159 = sphi 0, %s157
      %s160 = sphi 0, %s159
      %s174 = sphi 0, %s160
      %s180 = sphi 0, %s182
      %s183 = sphi 0, %s180
      %s184 = sphi 0, %s183
      %s200 = sphi 0, %s184
    $region4: #{reward_net_forward.1} parent=1 // loop_header_branch
      %21 = sbr.rel (%p19) target = $region8
    $region5: #{reward_net_forward.1} parent=1 // loop_body
      %s23 = ssub.s32 %s18, 1
      %s24 = ssub.s32 %s18, 2
      %s25 = sadd.s32 %s18, 1
      %s26 = ssub.s32 %s18, %s25
      %p27 = scmp.eq.s32.totalorder %s26, 0
      %s29 = sadd.s32 %s28, 1
      %s30 = scalar_select %p27, %s28, %s29
      %p33 = pneg %p27
      %p34 = scmp.eq.s32.totalorder %s18, 1
      %p35 = por %p33, %p34
      %p36 = scmp.ne.s32.totalorder %s28, %s31
      %p37 = scmp.eq.s32.totalorder %s18, 0
      %p38 = por %p36, %p37
      %p39 = scmp.ne.s32.totalorder %s28, %s31
      %p40 = scmp.eq.s32.totalorder %s23, 1
      %p41 = por %p39, %p40
      %p42 = scmp.ne.s32.totalorder %s31, %s32
      %p43 = scmp.eq.s32.totalorder %s23, 0
      %p44 = por %p42, %p43
      %p45 = scmp.ne.s32.totalorder %s31, %s32
      %p46 = scmp.eq.s32.totalorder %s24, 1
      %p47 = por %p45, %p46
      %p49 = scmp.ne.s32.totalorder %s32, %s48
      %p50 = scmp.eq.s32.totalorder %s24, 0
      %p51 = por %p49, %p50
      %s53 = sadd.s32 %s52, 1
      %p56 = scmp.eq.s32.totalorder %s18, 1
      %p57 = scmp.ne.s32.totalorder %s52, %s54
      %p58 = scmp.eq.s32.totalorder %s18, 0
      %p59 = por %p57, %p58
      %p60 = scmp.ne.s32.totalorder %s52, %s54
      %p61 = scmp.eq.s32.totalorder %s23, 1
      %p62 = por %p60, %p61
      %p63 = scmp.ne.s32.totalorder %s54, %s55
      %p64 = scmp.eq.s32.totalorder %s23, 0
      %p65 = por %p63, %p64
      %p66 = scmp.ne.s32.totalorder %s54, %s55
      %p67 = scmp.eq.s32.totalorder %s24, 1
      %p68 = por %p66, %p67
      %p70 = scmp.ne.s32.totalorder %s55, %s69
      %p71 = scmp.eq.s32.totalorder %s24, 0
      %p72 = por %p70, %p71
      %s74 = sadd.s32 %s73, 1
      %p77 = scmp.eq.s32.totalorder %s18, 1
      %p78 = scmp.ne.s32.totalorder %s73, %s75
      %p79 = scmp.eq.s32.totalorder %s18, 0
      %p80 = por %p78, %p79
      %p81 = scmp.ne.s32.totalorder %s73, %s75
      %p82 = scmp.eq.s32.totalorder %s23, 1
      %p83 = por %p81, %p82
      %p84 = scmp.ne.s32.totalorder %s75, %s76
      %p85 = scmp.eq.s32.totalorder %s23, 0
      %p86 = por %p84, %p85
      %p87 = scmp.ne.s32.totalorder %s75, %s76
      %p88 = scmp.eq.s32.totalorder %s24, 1
      %p89 = por %p87, %p88
      %p91 = scmp.ne.s32.totalorder %s76, %s90
      %p92 = scmp.eq.s32.totalorder %s24, 0
      %p93 = por %p91, %p92
      %s95 = sadd.s32 %s94, 1
      %p98 = scmp.eq.s32.totalorder %s18, 1
      %p99 = scmp.ne.s32.totalorder %s94, %s96
      %p100 = scmp.eq.s32.totalorder %s18, 0
      %p101 = por %p99, %p100
      %p102 = scmp.ne.s32.totalorder %s94, %s96
      %p103 = scmp.eq.s32.totalorder %s23, 1
      %p104 = por %p102, %p103
      %p105 = scmp.ne.s32.totalorder %s96, %s97
      %p106 = scmp.eq.s32.totalorder %s23, 0
      %p107 = por %p105, %p106
      %p108 = scmp.ne.s32.totalorder %s96, %s97
      %p109 = scmp.eq.s32.totalorder %s24, 1
      %p110 = por %p108, %p109
      %p112 = scmp.ne.s32.totalorder %s97, %s111
      %p113 = scmp.eq.s32.totalorder %s24, 0
      %p114 = por %p112, %p113
      %s116 = sadd.s32 %s115, 1
      %p119 = scmp.eq.s32.totalorder %s18, 1
      %p120 = scmp.ne.s32.totalorder %s115, %s117
      %p121 = scmp.eq.s32.totalorder %s18, 0
      %p122 = por %p120, %p121
      %p123 = scmp.ne.s32.totalorder %s115, %s117
      %p124 = scmp.eq.s32.totalorder %s23, 1
      %p125 = por %p123, %p124
      %p126 = scmp.ne.s32.totalorder %s117, %s118
      %p127 = scmp.eq.s32.totalorder %s23, 0
      %p128 = por %p126, %p127
      %p129 = scmp.ne.s32.totalorder %s117, %s118
      %p130 = scmp.eq.s32.totalorder %s24, 1
      %p131 = por %p129, %p130
      %p133 = scmp.ne.s32.totalorder %s118, %s132
      %p134 = scmp.eq.s32.totalorder %s24, 0
      %p135 = por %p133, %p134
      %s137 = sadd.s32 %s136, 1
      %p140 = scmp.eq.s32.totalorder %s18, 1
      %p141 = scmp.ne.s32.totalorder %s136, %s138
      %p142 = scmp.eq.s32.totalorder %s18, 0
      %p143 = por %p141, %p142
      %p144 = scmp.ne.s32.totalorder %s136, %s138
      %p145 = scmp.eq.s32.totalorder %s23, 1
      %p146 = por %p144, %p145
      %p147 = scmp.ne.s32.totalorder %s138, %s139
      %p148 = scmp.eq.s32.totalorder %s23, 0
      %p149 = por %p147, %p148
      %p150 = scmp.ne.s32.totalorder %s138, %s139
      %p151 = scmp.eq.s32.totalorder %s24, 1
      %p152 = por %p150, %p151
      %p154 = scmp.ne.s32.totalorder %s139, %s153
      %p155 = scmp.eq.s32.totalorder %s24, 0
      %p156 = por %p154, %p155
      %s158 = sadd.s32 %s157, 1
      %p161 = scmp.eq.s32.totalorder %s18, 1
      %p162 = scmp.ne.s32.totalorder %s157, %s159
      %p163 = scmp.eq.s32.totalorder %s18, 0
      %p164 = por %p162, %p163
      %p165 = scmp.ne.s32.totalorder %s157, %s159
      %p166 = scmp.eq.s32.totalorder %s23, 1
      %p167 = por %p165, %p166
      %p168 = scmp.ne.s32.totalorder %s159, %s160
      %p169 = scmp.eq.s32.totalorder %s23, 0
      %p170 = por %p168, %p169
      %p171 = scmp.ne.s32.totalorder %s159, %s160
      %p172 = scmp.eq.s32.totalorder %s24, 1
      %p173 = por %p171, %p172
      %p175 = scmp.ne.s32.totalorder %s160, %s174
      %p176 = scmp.eq.s32.totalorder %s24, 0
      %p177 = por %p175, %p176
      %s178 = ssub.s32 %s18, %s25
      %p179 = scmp.eq.s32.totalorder %s178, 0
      %s181 = sadd.s32 %s180, 1
      %s182 = scalar_select %p179, %s180, %s181
      %p185 = pneg %p179
      %p186 = scmp.eq.s32.totalorder %s18, 1
      %p187 = por %p185, %p186
      %p188 = scmp.ne.s32.totalorder %s180, %s183
      %p189 = scmp.eq.s32.totalorder %s18, 0
      %p190 = por %p188, %p189
      %p191 = scmp.ne.s32.totalorder %s180, %s183
      %p192 = scmp.eq.s32.totalorder %s23, 1
      %p193 = por %p191, %p192
      %p194 = scmp.ne.s32.totalorder %s183, %s184
      %p195 = scmp.eq.s32.totalorder %s23, 0
      %p196 = por %p194, %p195
      %p197 = scmp.ne.s32.totalorder %s183, %s184
      %p198 = scmp.eq.s32.totalorder %s24, 1
      %p199 = por %p197, %p198
      %p201 = scmp.ne.s32.totalorder %s184, %s200
      %p202 = scmp.eq.s32.totalorder %s24, 0
      %p203 = por %p201, %p202
      %p204 = scmp.le.s32.totalorder 1, %s18
      %p205 = scmp.lt.s32.totalorder %s18, 3
      %p206 = pnand %p204, %p205
      %p207 = pneg %p206
      // Predicated region
      $region9: #{reward_net_forward.1} parent=5 // pred_check
        _
      $region10: #{reward_net_forward.1} parent=5 // pred_check_branch
        %209 = sbr.rel (%p206) target = $region12
      $region11: #{reward_net_forward.1} parent=5 // pred_region
        %s210 = ssub.s32 %s18, 1
        // Predicated region
        $region13: #{reward_net_forward.1} parent=11 // pred_check
          %p211 = pneg %p65
        $region14: #{reward_net_forward.1} parent=11 // pred_check_branch
          %213 = sbr.rel (%p211) target = $region16
        $region15: #{reward_net_forward.1} parent=11 // pred_region
          _
        $region16: #{reward_net_forward.1} parent=11 // pred_fallthru
          _
        // Predicated region
        $region17: #{reward_net_forward.1} parent=11 // pred_check
          %p214 = pneg %p86
        $region18: #{reward_net_forward.1} parent=11 // pred_check_branch
          %216 = sbr.rel (%p214) target = $region20
        $region19: #{reward_net_forward.1} parent=11 // pred_region
          _
        $region20: #{reward_net_forward.1} parent=11 // pred_fallthru
          _
        // Predicated region
        $region21: #{reward_net_forward.1} parent=11 // pred_check
          %p217 = pneg %p107
        $region22: #{reward_net_forward.1} parent=11 // pred_check_branch
          %219 = sbr.rel (%p217) target = $region24
        $region23: #{reward_net_forward.1} parent=11 // pred_region
          _
        $region24: #{reward_net_forward.1} parent=11 // pred_fallthru
          _
        // Predicated region
        $region25: #{reward_net_forward.1} parent=11 // pred_check
          %p220 = pneg %p128
        $region26: #{reward_net_forward.1} parent=11 // pred_check_branch
          %222 = sbr.rel (%p220) target = $region28
        $region27: #{reward_net_forward.1} parent=11 // pred_region
          _
        $region28: #{reward_net_forward.1} parent=11 // pred_fallthru
          _
        // Predicated region
        $region29: #{reward_net_forward.1} parent=11 // pred_check
          %p223 = pneg %p149
        $region30: #{reward_net_forward.1} parent=11 // pred_check_branch
          %225 = sbr.rel (%p223) target = $region32
        $region31: #{reward_net_forward.1} parent=11 // pred_region
          _
        $region32: #{reward_net_forward.1} parent=11 // pred_fallthru
          _
        // Predicated region
        $region33: #{reward_net_forward.1} parent=11 // pred_check
          %p226 = pneg %p170
        $region34: #{reward_net_forward.1} parent=11 // pred_check_branch
          %228 = sbr.rel (%p226) target = $region36
        $region35: #{reward_net_forward.1} parent=11 // pred_region
          _
        $region36: #{reward_net_forward.1} parent=11 // pred_fallthru
          _
      $region12: #{reward_net_forward.1} parent=5 // pred_fallthru
        _
      %p229 = scmp.lt.s32.totalorder %s18, 2
      // Predicated region
      $region37: #{reward_net_forward.1} parent=5 // pred_check
        %p230 = pneg %p229
      $region38: #{reward_net_forward.1} parent=5 // pred_check_branch
        %232 = sbr.rel (%p230) target = $region40
      $region39: #{reward_net_forward.1} parent=5 // pred_region
        // Predicated region
        $region41: #{reward_net_forward.1} parent=39 // pred_check
          %p233 = pneg %p38
        $region42: #{reward_net_forward.1} parent=39 // pred_check_branch
          %235 = sbr.rel (%p233) target = $region44
        $region43: #{reward_net_forward.1} parent=39 // pred_region
          %s236 = sand.u32 %s28, 1
          %s237 = sand.u32 %s28, 1
          %s238 = smul.addr %s237, 16
          %s239 = scalar_lea.vmem [#allocation3], %s238
          %s240 = smul.addr %s18, 4
          %s241 = scalar_lea.vmem %s0, %s240
          // Predicated region
          $region45: #{reward_net_forward.1} parent=43 // pred_check
            _
          $region46: #{reward_net_forward.1} parent=43 // pred_check_branch
            %243 = sbr.rel (0) target = $region48
          $region47: #{reward_net_forward.1} parent=43 // pred_region
            // Predicated region
            $region49: #{reward_net_forward.1} parent=47 // pred_check
              _
            $region50: #{reward_net_forward.1} parent=47 // pred_check_branch
              %245 = sbr.rel target = $region52
            $region51: #{reward_net_forward.1} parent=47 // pred_region
              // Predicated region
              $region64: #{reward_net_forward.1} parent=51 // pred_check
                _
              $region65: #{reward_net_forward.1} parent=51 // pred_check_branch
                %266 = sbr.rel (0) target = $region67
              $region66: #{reward_net_forward.1} parent=51 // pred_region
                loop: start=0, step=1, limit=1
                $region68: #{reward_net_forward.1} parent=66 // loop_pre_header
                  _
                $region69: #{reward_net_forward.1} parent=66 // loop_header
                  %s268 = sphi 0, %s272
                  %p269 = scmp.ge.s32.totalorder %s268, 1
                  %s273 = sphi %s241, %s241
                  %s274 = sphi %s239, %s239
                $region70: #{reward_net_forward.1} parent=66 // loop_header_branch
                  %271 = sbr.rel (%p269) target = $region74
                $region71: #{reward_net_forward.1} parent=66 // loop_body
                  _
                $region72: #{reward_net_forward.1} parent=66 // loop_footer
                  %s272 = sadd.s32 1, %s268
                $region73: #{reward_net_forward.1} parent=66 // loop_footer_branch
                  %267 = sbr.rel target = $region69
                $region74: #{reward_net_forward.1} parent=66 // loop_exit
                  _
                loop: start=0, step=1, limit=1
                $region75: #{reward_net_forward.1} parent=66 // loop_pre_header
                  _
                $region76: #{reward_net_forward.1} parent=66 // loop_header
                  %s277 = sphi 0, %s281
                  %p278 = scmp.ge.s32.totalorder %s277, 1
                  %s282 = sphi %s241, %s241
                  %s283 = sphi %s239, %s239
                $region77: #{reward_net_forward.1} parent=66 // loop_header_branch
                  %280 = sbr.rel (%p278) target = $region81
                $region78: #{reward_net_forward.1} parent=66 // loop_body
                  %v284 = vld [vmem:[%s282] sm:$0xf]
                  %285 = vst [vmem:[%s283] sm:$0xf] %v284
                  %v286 = vld [vmem:[%s282 + $0x8] sm:$0xf]
                  %287 = vst [vmem:[%s283 + $0x4] sm:$0xf] %v286
                  %v288 = vld [vmem:[%s282 + $0x10] sm:$0xf]
                  %289 = vst [vmem:[%s283 + $0x8] sm:$0xf] %v288
                  %v290 = vld [vmem:[%s282 + $0x18] sm:$0xf]
                  %291 = vst [vmem:[%s283 + $0xc] sm:$0xf] %v290
                $region79: #{reward_net_forward.1} parent=66 // loop_footer
                  %s281 = sadd.s32 1, %s277
                $region80: #{reward_net_forward.1} parent=66 // loop_footer_branch
                  %276 = sbr.rel target = $region76
                $region81: #{reward_net_forward.1} parent=66 // loop_exit
                  _
              $region67: #{reward_net_forward.1} parent=51 // pred_fallthru
                _
            $region52: #{reward_net_forward.1} parent=47 // pred_fallthru
              _
            // Predicated region
            $region53: #{reward_net_forward.1} parent=47 // pred_check
              _
            $region54: #{reward_net_forward.1} parent=47 // pred_check_branch
              %247 = sbr.rel (0) target = $region56
            $region55: #{reward_net_forward.1} parent=47 // pred_region
              loop: start=0, step=1, limit=1
              $region57: #{reward_net_forward.1} parent=55 // loop_pre_header
                _
              $region58: #{reward_net_forward.1} parent=55 // loop_header
                %s250 = sphi 0, %s254
                %p251 = scmp.ge.s32.totalorder %s250, 1
                %s255 = sphi %s241, %s241
                %s256 = sphi %s239, %s239
              $region59: #{reward_net_forward.1} parent=55 // loop_header_branch
                %253 = sbr.rel (%p251) target = $region63
              $region60: #{reward_net_forward.1} parent=55 // loop_body
                %v257 = vld [vmem:[%s255] sm:$0xf]
                %258 = vst [vmem:[%s256] sm:$0xf] %v257
                %v259 = vld [vmem:[%s255 + $0x8] sm:$0xf]
                %260 = vst [vmem:[%s256 + $0x4] sm:$0xf] %v259
                %v261 = vld [vmem:[%s255 + $0x10] sm:$0xf]
                %262 = vst [vmem:[%s256 + $0x8] sm:$0xf] %v261
                %v263 = vld [vmem:[%s255 + $0x18] sm:$0xf]
                %264 = vst [vmem:[%s256 + $0xc] sm:$0xf] %v263
              $region61: #{reward_net_forward.1} parent=55 // loop_footer
                %s254 = sadd.s32 1, %s250
              $region62: #{reward_net_forward.1} parent=55 // loop_footer_branch
                %249 = sbr.rel target = $region58
              $region63: #{reward_net_forward.1} parent=55 // loop_exit
                _
            $region56: #{reward_net_forward.1} parent=47 // pred_fallthru
              _
          $region48: #{reward_net_forward.1} parent=43 // pred_fallthru
            _
          %292 = vnop
        $region44: #{reward_net_forward.1} parent=39 // pred_fallthru
          _
      $region40: #{reward_net_forward.1} parent=5 // pred_fallthru
        _
      %p293 = scmp.le.s32.totalorder 1, %s18
      %p294 = scmp.lt.s32.totalorder %s18, 3
      %p295 = pnand %p293, %p294
      %p296 = pneg %p295
      // Predicated region
      $region82: #{reward_net_forward.1} parent=5 // pred_check
        _
      $region83: #{reward_net_forward.1} parent=5 // pred_check_branch
        %298 = sbr.rel (%p295) target = $region85
      $region84: #{reward_net_forward.1} parent=5 // pred_region
        %s299 = ssub.s32 %s18, 1
        %s300 = sand.u32 %s31, 1
        %s301 = sand.u32 %s31, 1
        %s302 = smul.addr %s301, 16
        %s303 = scalar_lea.vmem [#allocation3], %s302
        // Predicated region
        $region86: #{reward_net_forward.1} parent=84 // pred_check
          %p304 = pneg %p44
        $region87: #{reward_net_forward.1} parent=84 // pred_check_branch
          %306 = sbr.rel (%p304) target = $region89
        $region88: #{reward_net_forward.1} parent=84 // pred_region
          _
        $region89: #{reward_net_forward.1} parent=84 // pred_fallthru
          _
        %s307 = sand.u32 %s31, 1
        %s308 = sand.u32 %s31, 1
        %s309 = smul.addr %s308, 16
        %s310 = scalar_lea.vmem [#allocation3], %s309
        %p311 = pneg %p44
        %p312 = pneg %p41
        %p313 = pneg %p65
        %p314 = pneg %p62
        %p315 = pneg %p86
        %p316 = pneg %p83
        %p317 = pneg %p107
        %p318 = pneg %p104
        %p319 = pneg %p128
        %p320 = pneg %p125
        %p321 = pneg %p149
        %p322 = pneg %p146
        %p323 = pneg %p170
        %p324 = pneg %p167
        %p325 = pneg %p196
        %p326 = pneg %p193
        %s327 = sand.u32 %s183, 1
        %s328 = scalar_lea.sflag [#allocation5], %s327
        %s329 = sand.u32 %s183, 1
        %s330 = scalar_lea.vmem [#allocation4], %s329
        %v332 = vld [vmem:[%s303] sm:$0xf]
        %v333 = vld [vmem:[%s303 + $0x4] sm:$0xf]
        %v334 = vld [vmem:[%s303 + $0x8] sm:$0xf]
        %v335 = vld [vmem:[%s303 + $0xc] sm:$0xf]
        %v336 = vld [vmem:[%s1] sm:$0xf]
        %v337 = vld [vmem:[%s1 + $0x4] sm:$0xf]
        %v338 = vld [vmem:[%s1 + $0x8] sm:$0xf]
        %v339 = vld [vmem:[%s1 + $0xc] sm:$0xf]
        %v340 = vld [vmem:[%s1 + $0x10] sm:$0xf]
        %v341 = vld [vmem:[%s1 + $0x14] sm:$0xf]
        %v342 = vld [vmem:[%s1 + $0x18] sm:$0x1]
        %v343 = vld [vmem:[%s2] sm:$0xff]
        %v344 = vld [vmem:[%s2 + $0x8] sm:$0xff]
        %v345 = vld [vmem:[%s2 + $0x10] sm:$0xff]
        %v346 = vld [vmem:[%s2 + $0x18] sm:$0xff]
        %v347 = vld [vmem:[%s2 + $0x20] sm:$0xff]
        %v348 = vld [vmem:[%s2 + $0x28] sm:$0xff]
        %v349 = vld [vmem:[%s2 + $0x30] sm:$0x3]
        %351 = vset.pattern.permute.xlu0 0
        %352 = vperm.xlu0 %351, %v343
        %v353 = vpop.permute.xlu0 %352
        %356 = vset.pattern.permute.xlu0 0
        %357 = vperm.xlu0 %356, %v344
        %v358 = vpop.permute.xlu0 %357
        %361 = vset.pattern.permute.xlu0 0
        %362 = vperm.xlu0 %361, %v345
        %v363 = vpop.permute.xlu0 %362
        %366 = vset.pattern.permute.xlu0 0
        %367 = vperm.xlu0 %366, %v346
        %v368 = vpop.permute.xlu0 %367
        %371 = vset.pattern.permute.xlu0 0
        %372 = vperm.xlu0 %371, %v347
        %v373 = vpop.permute.xlu0 %372
        %376 = vset.pattern.permute.xlu0 0
        %377 = vperm.xlu0 %376, %v348
        %v378 = vpop.permute.xlu0 %377
        %381 = vset.pattern.permute.xlu0 0
        %382 = vperm.xlu0 %381, %v349
        %v383 = vpop.permute.xlu0 %382
        %v392 = vunpack.c.l.b16 %v336
        %v393 = vunpack.c.l.b16 %v337
        %v394 = vunpack.c.l.b16 %v338
        %v395 = vunpack.c.l.b16 %v339
        %v396 = vunpack.c.l.b16 %v340
        %v397 = vunpack.c.l.b16 %v341
        %v398 = vunpack.c.l.b16 %v342
        %v399 = vpack.c.b16 %v393, %v392
        %v400 = vpack.c.b16 %v395, %v394
        %v401 = vpack.c.b16 %v397, %v396
        %v402 = vpack.c.b16 %v398, %v398
        %v407 = vunpack.c.l.b16 %v332
        %v408 = vunpack.c.l.b16 %v333
        %v409 = vunpack.c.l.b16 %v334
        %v410 = vunpack.c.l.b16 %v335
        %v411 = vpack.c.b16 %v408, %v407
        %v412 = vpack.c.b16 %v410, %v409
        %vm415 = vcmask 261120
        %v417 = vsel %vm415, %v399, 0
        %v420 = vsel %vm415, %v400, 0
        %v423 = vsel %vm415, %v401, 0
        %v426 = vsel %vm415, %v402, 0
        %428 = vmatprep.subr.bf16.mxu0 0
        %429 = vmatpush1.bf16.msra.mxu0 %v411
        %430 = vmatprep.subr.bf16.mxu0 0
        %431 = vmatpush1.bf16.msra.mxu0 %v412
        %432 = vmatprep.subr.bf16.mxu0 0
        %433 = vmatpush1.bf16.msra.mxu0 0
        %434 = vmatprep.subr.bf16.mxu0 0
        %435 = vmatpush1.bf16.msra.mxu0 0
        %436 = vmatprep.subr.bf16.mxu0 0
        %437 = vmatpush1.bf16.msra.mxu0 0
        %438 = vmatprep.subr.bf16.mxu0 0
        %439 = vmatpush1.bf16.msra.mxu0 0
        %440 = vmatprep.subr.bf16.mxu0 0
        %441 = vmatpush1.bf16.msra.mxu0 0
        %442 = vmatprep.subr.bf16.mxu0 0
        %443 = vmatpush1.bf16.msra.mxu0 0
        %444 = vmatprep.subr.bf16.mxu0 0
        %445 = vmatpush1.bf16.msra.mxu0 0
        %446 = vmatprep.subr.bf16.mxu0 0
        %447 = vmatpush1.bf16.msra.mxu0 0
        %448 = vmatprep.subr.bf16.mxu0 0
        %449 = vmatpush1.bf16.msra.mxu0 0
        %450 = vmatprep.subr.bf16.mxu0 0
        %451 = vmatpush1.bf16.msra.mxu0 0
        %452 = vmatprep.subr.bf16.mxu0 0
        %453 = vmatpush1.bf16.msra.mxu0 0
        %454 = vmatprep.subr.bf16.mxu0 0
        %455 = vmatpush1.bf16.msra.mxu0 0
        %456 = vmatprep.subr.bf16.mxu0 0
        %457 = vmatpush1.bf16.msra.mxu0 0
        %458 = vmatprep.subr.bf16.mxu0 0
        %459 = vmatpush1.bf16.msra.mxu0 0
        %460 = vmatprep.mubr.bf16.mxu0 0
        %461 = vmatmul.mubr.bf16.gmra.mrb[0].mxu0 %v417
        %v462 = vpop.f32.mrb[0].mxu0
        %v463 = vadd.f32 %v353, %v462
        %v464 = vpop.f32.mrb[0].mxu0
        %v465 = vpop.f32.mrb[0].mxu0
        %v466 = vadd.f32 %v358, %v465
        %v467 = vpop.f32.mrb[0].mxu0
        %468 = vmatprep.mubr.bf16.mxu0 0
        %469 = vmatmul.mubr.bf16.gmra.mrb[0].mxu0 %v420
        %v470 = vpop.f32.mrb[0].mxu0
        %v471 = vadd.f32 %v363, %v470
        %v472 = vpop.f32.mrb[0].mxu0
        %v473 = vpop.f32.mrb[0].mxu0
        %v474 = vadd.f32 %v368, %v473
        %v475 = vpop.f32.mrb[0].mxu0
        %476 = vmatprep.mubr.bf16.mxu0 0
        %477 = vmatmul.mubr.bf16.gmra.mrb[0].mxu0 %v423
        %v478 = vpop.f32.mrb[0].mxu0
        %v479 = vadd.f32 %v373, %v478
        %v480 = vpop.f32.mrb[0].mxu0
        %v481 = vpop.f32.mrb[0].mxu0
        %v482 = vadd.f32 %v378, %v481
        %v483 = vpop.f32.mrb[0].mxu0
        %484 = vmatprep.mubr.bf16.mxu0 0
        %485 = vmatmul.mubr.bf16.gmra.mrb[0].mxu0 %v426
        %v486 = vpop.f32.mrb[0].mxu0
        %v487 = vadd.f32 %v383, %v486
        %v488 = vpop.f32.mrb[0].mxu0
        %v489 = vpop.f32.mrb[0].mxu0
        %v490 = vpop.f32.mrb[0].mxu0
        %491 = vdwg.mxu0
        %v492 = vmax.f32 %v463, 0.0
        %v493 = vmax.f32 %v466, 0.0
        %v494 = vmax.f32 %v471, 0.0
        %v495 = vmax.f32 %v474, 0.0
        %v496 = vmax.f32 %v479, 0.0
        %v497 = vmax.f32 %v482, 0.0
        %v498 = vmax.f32 %v487, 0.0
        %v499 = vpack.c.bf16 %v493, %v492
        %v500 = vpack.c.bf16 %v495, %v494
        %v501 = vpack.c.bf16 %v497, %v496
        %v502 = vpack.c.bf16 %v498, %v498
        %v503 = vld [vmem:[%s3] sm:$0xf]
        %v504 = vld [vmem:[%s3 + $0x4] sm:$0x1]
        %v505 = vld [vmem:[%s4] sm:$0xff]
        %v506 = vld [vmem:[%s4 + $0x8] sm:$0x3]
        %508 = vset.pattern.permute.xlu0 0
        %509 = vperm.xlu0 %508, %v505
        %v510 = vpop.permute.xlu0 %509
        %513 = vset.pattern.permute.xlu0 0
        %514 = vperm.xlu0 %513, %v506
        %v515 = vpop.permute.xlu0 %514
        %v519 = vunpack.c.l.b16 %v503
        %v520 = vunpack.c.l.b16 %v504
        %v521 = vpack.c.b16 %v520, %v519
        %vm522 = vcmask 408576
        %v524 = vsel %vm522, %v521, 0
        %vm526 = vcmask 1040384
        %v528 = vsel %vm526, %v502, 0
        %530 = vmatprep.subr.bf16.mxu0 0
        %531 = vmatpush1.bf16.msra.mxu0 %v499
        %532 = vmatprep.subr.bf16.mxu0 0
        %533 = vmatpush1.bf16.msra.mxu0 %v500
        %534 = vmatprep.subr.bf16.mxu0 0
        %535 = vmatpush1.bf16.msra.mxu0 %v501
        %536 = vmatprep.subr.bf16.mxu0 0
        %537 = vmatpush1.bf16.msra.mxu0 %v528
        %538 = vmatprep.subr.bf16.mxu0 0
        %539 = vmatpush1.bf16.msra.mxu0 0
        %540 = vmatprep.subr.bf16.mxu0 0
        %541 = vmatpush1.bf16.msra.mxu0 0
        %542 = vmatprep.subr.bf16.mxu0 0
        %543 = vmatpush1.bf16.msra.mxu0 0
        %544 = vmatprep.subr.bf16.mxu0 0
        %545 = vmatpush1.bf16.msra.mxu0 0
        %546 = vmatprep.subr.bf16.mxu0 0
        %547 = vmatpush1.bf16.msra.mxu0 0
        %548 = vmatprep.subr.bf16.mxu0 0
        %549 = vmatpush1.bf16.msra.mxu0 0
        %550 = vmatprep.subr.bf16.mxu0 0
        %551 = vmatpush1.bf16.msra.mxu0 0
        %552 = vmatprep.subr.bf16.mxu0 0
        %553 = vmatpush1.bf16.msra.mxu0 0
        %554 = vmatprep.subr.bf16.mxu0 0
        %555 = vmatpush1.bf16.msra.mxu0 0
        %556 = vmatprep.subr.bf16.mxu0 0
        %557 = vmatpush1.bf16.msra.mxu0 0
        %558 = vmatprep.subr.bf16.mxu0 0
        %559 = vmatpush1.bf16.msra.mxu0 0
        %560 = vmatprep.subr.bf16.mxu0 0
        %561 = vmatpush1.bf16.msra.mxu0 0
        %562 = vmatprep.mubr.bf16.mxu0 0
        %563 = vmatmul.mubr.bf16.gmra.mrb[0].mxu0 %v524
        %v564 = vpop.f32.mrb[0].mxu0
        %v565 = vadd.f32 %v510, %v564
        %v566 = vpop.f32.mrb[0].mxu0
        %v567 = vpop.f32.mrb[0].mxu0
        %v568 = vadd.f32 %v515, %v567
        %v569 = vpop.f32.mrb[0].mxu0
        %570 = vdwg.mxu0
        %v571 = vmax.f32 %v565, 0.0
        %v572 = vmax.f32 %v568, 0.0
        %v573 = vld [vmem:[%s5] sm:$0xff]
        %v574 = vld [vmem:[%s5 + $0x8] sm:$0x3]
        %576 = vset.pattern.permute.xlu0 0
        %577 = vperm.xlu0 %576, %v573
        %v578 = vpop.permute.xlu0 %577
        %581 = vset.pattern.permute.xlu0 0
        %582 = vperm.xlu0 %581, %v574
        %v583 = vpop.permute.xlu0 %582
        %v585 = vmul.f32 %v571, %v578
        %v586 = vmul.f32 %v572, %v583
        %vm587 = vcmask 1041408
        %v588 = vsel %vm587, %v586, 0.0
        %v589 = vadd.f32 %v585, %v588
        %v590 = vrot.slane %v589, 4
        %v591 = vadd.f32 %v589, %v590
        %v592 = vrot.slane %v591, 2
        %v593 = vadd.f32 %v591, %v592
        %v594 = vrot.slane %v593, 1
        %v595 = vadd.f32 %v593, %v594
        %v596 = vld [vmem:[#allocation2] sm:$0x1]
        %598 = vset.pattern.permute.xlu0 0
        %599 = vperm.xlu0 %598, %v596
        %v600 = vpop.permute.xlu0 %599
        %v602 = vlaneseq
        %v603 = vshrl.u32 %v602, 7
        %v604 = vsub.s32 0, %v603
        %v605 = vrot.slane %v600, %v604
        %v606 = vadd.f32 %v595, %v605
        %607 = vst [vmem:[%s330] sm:$0x1] %v606
        %s608 = sand.u32 %s183, 1
        %s609 = scalar_lea.sflag [#allocation5], %s608
        %s610 = sand.u32 %s183, 1
        %s611 = scalar_lea.vmem [#allocation4], %s610
        // Predicated region
        $region90: #{reward_net_forward.1} parent=84 // pred_check
          %p612 = pneg %p193
        $region91: #{reward_net_forward.1} parent=84 // pred_check_branch
          %614 = sbr.rel (%p612) target = $region93
        $region92: #{reward_net_forward.1} parent=84 // pred_region
          %s616 = ssub.s32 16, 16
          %617 = vsyncadd %s609, %s616
          %s618 = smul.addr %s23, 16
          %s619 = scalar_lea.hbm %s7, %s618
          %s621 = sshll.u32 %s611, 4
          %s622 = int_to_ptr.vmem [resolvable:$true] %s621
          %624 = dma.vmem_to_hbm [thread:$0]  %s622, 16, %s619, %s609
        $region93: #{reward_net_forward.1} parent=84 // pred_fallthru
          _
      $region85: #{reward_net_forward.1} parent=5 // pred_fallthru
        _
      %p625 = scmp.le.s32.totalorder 2, %s18
      // Predicated region
      $region94: #{reward_net_forward.1} parent=5 // pred_check
        %p626 = pneg %p625
      $region95: #{reward_net_forward.1} parent=5 // pred_check_branch
        %628 = sbr.rel (%p626) target = $region97
      $region96: #{reward_net_forward.1} parent=5 // pred_region
        %s629 = ssub.s32 %s18, 2
        // Predicated region
        $region98: #{reward_net_forward.1} parent=96 // pred_check
          %p630 = pneg %p199
        $region99: #{reward_net_forward.1} parent=96 // pred_check_branch
          %632 = sbr.rel (%p630) target = $region101
        $region100: #{reward_net_forward.1} parent=96 // pred_region
          %s633 = sand.u32 %s184, 1
          %s634 = scalar_lea.sflag [#allocation5], %s633
          %s635 = sand.u32 %s184, 1
          %s636 = scalar_lea.vmem [#allocation4], %s635
          %637 = dma.done %s634, 16
        $region101: #{reward_net_forward.1} parent=96 // pred_fallthru
          _
      $region97: #{reward_net_forward.1} parent=5 // pred_fallthru
        _
    $region6: #{reward_net_forward.1} parent=1 // loop_footer
      %s22 = sadd.s32 1, %s18
    $region7: #{reward_net_forward.1} parent=1 // loop_footer_branch
      %17 = sbr.rel target = $region3
    $region8: #{reward_net_forward.1} parent=1 // loop_exit
      _
    %638 = vsyncpa [#allocation5], 1
    %s639 = scalar_lea.sflag [#allocation5], 1
    %640 = vsyncpa %s639, 1

</llo_original>
